<compile_context>
chip_gen: v7x
topology: tpu7x:2x2x1
jax: 0.10.0
libtpu: 0.0.40
codegen_flags: <defaults>
</compile_context>

<pallas_src>
import jax
import jax.numpy as jnp
from jax.experimental import pallas as pl
from jax.experimental.pallas import tpu as pltpu

_LANE = 128                              # TPU lane width: trailing block dim
_SUBLANE = 8                             # f32 sublane count
_TARGET_BLOCK_BYTES = 4 * 1024 * 1024    # ~4 MiB clip/out blocks (amortises step overhead)
_VMEM_BUDGET = 24 * 1024 * 1024          # double-buffered user working set
_VMEM_LIMIT = 32 * 1024 * 1024           # explicit scoped-VMEM limit (safe v5e..v7x)


def _round_up(x: int, m: int) -> int:
    return (x + m - 1) // m * m


def _sublanes(itemsize: int) -> int:
    # Sub-32-bit dtypes pack along sublanes: 8 rows (f32), 16 (bf16), 32 (int8).
    return max(_SUBLANE, (4 // max(itemsize, 1)) * _SUBLANE)


# --------------------------------------------------------------------------- #
# Pallas kernel: out = clip + alpha * (noise - clip)  (== (1-a)*clip + a*noise)
# --------------------------------------------------------------------------- #
def _mix_kernel(alpha_ref, clip_ref, noise_ref, out_ref):
    # alpha_ref: (1,) f32 in SMEM.  clip/out blocks: (B_blk, TILE_S).
    # noise block: (1, TILE_S) -> broadcast over the batch (sublane) rows.
    a = alpha_ref[0]
    c = clip_ref[...]
    n = noise_ref[...]
    out_ref[...] = (c + a * (n - c)).astype(out_ref.dtype)


def _choose_blocks(batch: int, samples: int, itemsize: int) -> tuple[int, int]:
    """Pick (batch_block, sample_tile) for the (B, S) layout."""
    sub = _sublanes(itemsize)
    s_up = _round_up(samples, _LANE)

    def per_step_bytes(b_blk: int, tile: int) -> int:
        # clip-in + out blocks (b_blk rows each) plus the (1, tile) noise block
        # (padded to one sublane tile), each double-buffered by the pipeline.
        rows = 2 * _round_up(b_blk, sub) + sub
        return 2 * rows * tile * itemsize

    # Prefer a full-batch block (legal for any batch size; batch grid axis = 1).
    b_blk = batch
    if per_step_bytes(batch, _LANE) > _VMEM_BUDGET:
        # Very large batch: tile the batch axis in sublane multiples instead.
        max_rows = _VMEM_BUDGET // (2 * _LANE * itemsize)
        b_blk = max(sub, ((max_rows - sub) // 2) // sub * sub)
        b_blk = min(b_blk, batch)

    # Largest sample tile keeping each clip/out block near ~4 MiB while the
    # double-buffered working set stays inside the VMEM budget.
    rows = _round_up(b_blk, sub)
    tile = _TARGET_BLOCK_BYTES // (rows * itemsize)
    tile = max(_LANE, (tile // _LANE) * _LANE)
    tile = min(tile, s_up)
    while per_step_bytes(b_blk, tile) > _VMEM_BUDGET and tile > _LANE:
        tile -= _LANE
    return b_blk, tile


def background_noise_mix(clip: jax.Array, noise: jax.Array,
                         alpha: jax.Array) -> jax.Array:
    """out = (1 - alpha) * clip + alpha * noise.  clip: (B, S), noise: (S,)."""
    assert jnp.issubdtype(clip.dtype, jnp.floating), "audio clip must be float"
    b, s = clip.shape
    noise = noise.reshape(-1)
    assert noise.shape[0] == s, "noise window must match clip length"

    noise2 = noise.reshape(1, s)                      # (1, S): sublane-broadcast source
    alpha = jnp.asarray(alpha, jnp.float32).reshape(1)

    itemsize = jnp.dtype(clip.dtype).itemsize
    b_blk, tile = _choose_blocks(b, s, itemsize)
    grid = (pl.cdiv(s, tile), pl.cdiv(b, b_blk))      # batch innermost: noise tile
                                                      # is reused across batch blocks
    return pl.pallas_call(
        _mix_kernel,
        out_shape=jax.ShapeDtypeStruct((b, s), clip.dtype),
        grid_spec=pl.GridSpec(
            grid=grid,
            in_specs=[
                pl.BlockSpec(memory_space=pltpu.MemorySpace.SMEM),       # alpha
                pl.BlockSpec((b_blk, tile), lambda si, bi: (bi, si)),    # clip
                pl.BlockSpec((1, tile), lambda si, bi: (0, si)),         # noise
            ],
            out_specs=pl.BlockSpec((b_blk, tile), lambda si, bi: (bi, si)),
        ),
        compiler_params=pltpu.CompilerParams(
            dimension_semantics=("parallel", "parallel"),
            vmem_limit_bytes=_VMEM_LIMIT),
    )(alpha, clip, noise2)


# --------------------------------------------------------------------------- #
# Module-equivalent wrapper (glue in plain JAX)
# --------------------------------------------------------------------------- #
class BackgroundNoise:
    """JAX/Pallas re-implementation of the forward pass of BackgroundNoise."""

    def __init__(self, *, sample_rate: int, chunk_length_s: int,
                 alpha_range=(0.1, 0.3), noise_bank_len: int = 8192,
                 norm: bool = False):
        self.sample_rate = sample_rate
        self.length = chunk_length_s
        self.alpha_range = alpha_range
        self.norm = norm
        self.clip_len = sample_rate * chunk_length_s
        # TODO(synk): original loads noise waveforms from disk (torchaudio /
        # torch.load + .pt caching + resampling); a deterministic synthetic
        # in-memory waveform stands in for one noise file here.
        bank_len = max(noise_bank_len, self.clip_len + 1)   # bank > clip_len
        self._noise_bank = jax.random.normal(
            jax.random.PRNGKey(1234), (bank_len,), dtype=jnp.float32)

    def _sample(self, key: jax.Array):
        """Sample (alpha, noise_clip) the way the torch module does per call."""
        k_alpha, k_start = jax.random.split(key)
        alpha = jax.random.uniform(
            k_alpha, (), dtype=jnp.float32,
            minval=self.alpha_range[0], maxval=self.alpha_range[1])

        waveform = self._noise_bank
        if self.norm:
            # TODO(synk): utils.norm() exact formula unavailable; peak-normalize.
            waveform = waveform / (jnp.max(jnp.abs(waveform)) + 1e-8)

        # choose_random_noise(): random contiguous window of length clip_len.
        max_start = max(int(waveform.shape[0]) - self.clip_len, 1)
        start_idx = jax.random.randint(k_start, (), 0, max_start)
        noise_clip = jax.lax.dynamic_slice(waveform, (start_idx,),
                                           (self.clip_len,))
        return alpha, noise_clip

    def __call__(self, clip: jax.Array, key: jax.Array) -> jax.Array:
        alpha, noise_clip = self._sample(key)
        return background_noise_mix(clip, noise_clip, alpha)


# --------------------------------------------------------------------------- #
if __name__ == "__main__":
    # Small deterministic example: 1 kHz sample rate, 2 s chunks, batch of 4.
    # S = 2000 is NOT a multiple of 128, exercising the pad-free masked tail tile.
    sample_rate = 1000
    chunk_length_s = 2
    batch = 4
    num_samples = sample_rate * chunk_length_s  # 2000

    key = jax.random.PRNGKey(0)
    k_clip, k_fwd = jax.random.split(key)
    clip = jax.random.normal(k_clip, (batch, num_samples), dtype=jnp.float32)

    module = BackgroundNoise(sample_rate=sample_rate,
                             chunk_length_s=chunk_length_s,
                             alpha_range=(0.1, 0.3))
    out = jax.block_until_ready(module(clip, k_fwd))

    # Pure-JAX reference check (same key => same alpha / noise window).
    alpha_ref, noise_ref = module._sample(k_fwd)
    ref = (1.0 - alpha_ref) * clip + alpha_ref * noise_ref[None, :]

    assert out.shape == clip.shape and out.dtype == clip.dtype
    assert jnp.allclose(out, ref, atol=1e-5, rtol=1e-5)
    print("KERNEL_OK")
</pallas_src>

<mosaic_0001>
module attributes {stable_mosaic.version = 11 : i64} {
  func.func @_mix_kernel(%arg0: i32, %arg1: i32, %arg2: memref<1xf32, #tpu.memory_space<smem>>, %arg3: memref<4x2048xf32, #tpu.memory_space<vmem>>, %arg4: memref<1x2048xf32, #tpu.memory_space<vmem>>, %arg5: memref<4x2048xf32, #tpu.memory_space<vmem>>) attributes {dimension_semantics = [#tpu.dimension_semantics<parallel>, #tpu.dimension_semantics<parallel>], iteration_bounds = array<i64: 1, 1>, scalar_prefetch = 0 : i64, scratch_operands = 0 : i64, tpu.core_type = #tpu.core_type<tc>, window_params = [{transform_indices = @transform_0, window_bounds = array<i64: 1>}, {transform_indices = @transform_1, window_bounds = array<i64: 4, 2048>}, {transform_indices = @transform_2, window_bounds = array<i64: 1, 2048>}, {transform_indices = @transform_3, window_bounds = array<i64: 4, 2048>}]} {
    %c0 = arith.constant 0 : index
    %0 = memref.load %arg2[%c0] : memref<1xf32, #tpu.memory_space<smem>>
    %c0_0 = arith.constant 0 : index
    %c0_1 = arith.constant 0 : index
    %1 = vector.load %arg3[%c0_0, %c0_1] : memref<4x2048xf32, #tpu.memory_space<vmem>>, vector<4x2048xf32>
    %c0_2 = arith.constant 0 : index
    %c0_3 = arith.constant 0 : index
    %2 = vector.load %arg4[%c0_2, %c0_3] : memref<1x2048xf32, #tpu.memory_space<vmem>>, vector<1x2048xf32>
    %3 = vector.broadcast %2 : vector<1x2048xf32> to vector<4x2048xf32>
    %4 = arith.subf %3, %1 : vector<4x2048xf32>
    %5 = vector.broadcast %0 : f32 to vector<4x2048xf32>
    %6 = arith.mulf %5, %4 : vector<4x2048xf32>
    %7 = arith.addf %1, %6 : vector<4x2048xf32>
    %c0_4 = arith.constant 0 : index
    %c0_5 = arith.constant 0 : index
    %8 = vector.load %arg5[%c0_4, %c0_5] : memref<4x2048xf32, #tpu.memory_space<vmem>>, vector<4x2048xf32>
    tpu.vector_store %arg5[%c0_4, %c0_5], %7 {strides = array<i32>} : memref<4x2048xf32, #tpu.memory_space<vmem>>, vector<4x2048xf32>,
    return
  }
  func.func @transform_0(%arg0: i32, %arg1: i32) -> i32 {
    %c0_i32 = arith.constant 0 : i32
    %c0_i32_0 = arith.constant 0 : i32
    return %c0_i32 : i32
  }
  func.func @transform_1(%arg0: i32, %arg1: i32) -> (i32, i32) {
    %c0_i32 = arith.constant 0 : i32
    return %arg1, %arg0 : i32, i32
  }
  func.func @transform_2(%arg0: i32, %arg1: i32) -> (i32, i32) {
    %c0_i32 = arith.constant 0 : i32
    %c0_i32_0 = arith.constant 0 : i32
    return %c0_i32, %arg0 : i32, i32
  }
  func.func @transform_3(%arg0: i32, %arg1: i32) -> (i32, i32) {
    %c0_i32 = arith.constant 0 : i32
    return %arg1, %arg0 : i32, i32
  }
}

</mosaic_0001>

<llo_original>
// kernel: tpu_custom_call.1
$region0: #{tpu_custom_call.1}
  #allocation0 [shape = 'u32[]', space=smem, size = 0x4, offset = 0x4, fixed_abs, tag = 'smem constant byte address 0x4 - core index']
  #allocation1 [shape = 'u32[144,128]{1,0:T(1,128)}', space=vmem, size = 0x12000, scoped, tag = 'internal scratch']
  #allocation2 [shape = 'f32[1]{0:T(128)S(6)}', space=smem, size = 0x200, scoped, tag = 'scoped memory for tpu_custom_call.1']
  %s0 = inlined_call_operand.<no memory space> [shape: f32[1], index: 0, kind: input, shape index: {}]
  %s1 = inlined_call_operand.hbm [shape: f32[4,2000], index: 1, kind: input, shape index: {}]
  %s2 = inlined_call_operand.hbm [shape: f32[1,2000], index: 2, kind: input, shape index: {}]
  %s3 = inlined_call_operand.hbm [shape: f32[4,2000], index: 3, kind: output, shape index: {}]
  %s4 = sld [smem:[#allocation0]]
  $region30: #{tpu_custom_call.1} parent=0
    _
  %s6 = ssub.s32 1, %s4
  %s7 = scalar_select 0, %s6, %s4
  %8 = sst [smem:[#allocation2]] %s0
  $region1: #{tpu_custom_call.1} parent=0
    #allocation3 [shape = 'u8[32768]{0}', space=vmem, size = 0x8000, scoped, tag = 'input window, operand 1, single buffered']
    #allocation4 [shape = 's32[1]{0}', space=sflag, size = 0x4, scoped, tag = 'scoped memory for tpu_custom_call.1']
    #allocation5 [shape = 's32[1]{0}', space=sflag, size = 0x4, scoped, tag = 'scoped memory for tpu_custom_call.1']
    #allocation6 [shape = 'u8[8192]{0}', space=vmem, size = 0x2000, scoped, tag = 'input window, operand 2, single buffered']
    #allocation7 [shape = 's32[1]{0}', space=sflag, size = 0x4, scoped, tag = 'scoped memory for tpu_custom_call.1']
    #allocation8 [shape = 'u8[32768]{0}', space=vmem, size = 0x8000, scoped, tag = 'output window, operand 0, single buffered']
    %9 = vsyncpa [#allocation4], 0
    %10 = vsyncpa [#allocation7], 0
    %11 = vsyncpa [#allocation5], 0
    // Predicated region
    $region2: #{tpu_custom_call.1} parent=1 // pred_check
      _
    $region3: #{tpu_custom_call.1} parent=1 // pred_check_branch
      %13 = sbr.rel (0) target = $region5
    $region4: #{tpu_custom_call.1} parent=1 // pred_region
      _
    $region5: #{tpu_custom_call.1} parent=1 // pred_fallthru
      _
    // Predicated region
    $region6: #{tpu_custom_call.1} parent=1 // pred_check
      _
    $region7: #{tpu_custom_call.1} parent=1 // pred_check_branch
      %15 = sbr.rel (0) target = $region9
    $region8: #{tpu_custom_call.1} parent=1 // pred_region
      %s17 = ssub.s32 1024, 1024
      %18 = vsyncadd [#allocation4], %s17
      %s20 = sshll.u32 [#allocation3], 4
      %s21 = int_to_ptr.vmem [resolvable:$true] %s20
      %23 = dma.hbm_to_vmem [thread:$0]  %s1, 1024, %s21, [#allocation4]
    $region9: #{tpu_custom_call.1} parent=1 // pred_fallthru
      _
    // Predicated region
    $region10: #{tpu_custom_call.1} parent=1 // pred_check
      _
    $region11: #{tpu_custom_call.1} parent=1 // pred_check_branch
      %25 = sbr.rel (0) target = $region13
    $region12: #{tpu_custom_call.1} parent=1 // pred_region
      %s27 = ssub.s32 256, 256
      %28 = vsyncadd [#allocation7], %s27
      %s30 = sshll.u32 [#allocation6], 4
      %s31 = int_to_ptr.vmem [resolvable:$true] %s30
      %33 = dma.hbm_to_vmem [thread:$0]  %s2, 256, %s31, [#allocation7]
    $region13: #{tpu_custom_call.1} parent=1 // pred_fallthru
      _
    // Predicated region
    $region14: #{tpu_custom_call.1} parent=1 // pred_check
      _
    $region15: #{tpu_custom_call.1} parent=1 // pred_check_branch
      %35 = sbr.rel (0) target = $region17
    $region16: #{tpu_custom_call.1} parent=1 // pred_region
      %36 = dma.done [#allocation4], 1024
    $region17: #{tpu_custom_call.1} parent=1 // pred_fallthru
      _
    // Predicated region
    $region18: #{tpu_custom_call.1} parent=1 // pred_check
      _
    $region19: #{tpu_custom_call.1} parent=1 // pred_check_branch
      %38 = sbr.rel (0) target = $region21
    $region20: #{tpu_custom_call.1} parent=1 // pred_region
      %39 = dma.done [#allocation7], 256
    $region21: #{tpu_custom_call.1} parent=1 // pred_fallthru
      _
    %s40 = sld [smem:[#allocation2]]
    %v41 = vld [vmem:[#allocation3] sm:$0xff]
    %v42 = vld [vmem:[#allocation3 + $0x8] sm:$0xff]
    %v43 = vld [vmem:[#allocation3 + $0x10] sm:$0xff]
    %v44 = vld [vmem:[#allocation3 + $0x18] sm:$0xff]
    %v45 = vld [vmem:[#allocation3 + $0x20] sm:$0xff]
    %v46 = vld [vmem:[#allocation3 + $0x28] sm:$0xff]
    %v47 = vld [vmem:[#allocation3 + $0x30] sm:$0xff]
    %v48 = vld [vmem:[#allocation3 + $0x38] sm:$0xff]
    %v49 = vld [vmem:[#allocation6] sm:$0xff]
    %v50 = vld [vmem:[#allocation6 + $0x8] sm:$0xff]
    %v53 = vlaneseq
    %v54 = vshrl.u32 %v53, 7
    %v55 = vsub.s32 0, %v54
    %v56 = vrot.slane %v49, %v55
    %v57 = vlaneseq
    %v58 = vshrl.u32 %v57, 7
    %v59 = vsub.s32 1, %v58
    %v60 = vrot.slane %v49, %v59
    %v61 = vlaneseq
    %v62 = vshrl.u32 %v61, 7
    %v63 = vsub.s32 2, %v62
    %v64 = vrot.slane %v49, %v63
    %v65 = vlaneseq
    %v66 = vshrl.u32 %v65, 7
    %v67 = vsub.s32 3, %v66
    %v68 = vrot.slane %v49, %v67
    %v69 = vlaneseq
    %v70 = vshrl.u32 %v69, 7
    %v71 = vsub.s32 4, %v70
    %v72 = vrot.slane %v49, %v71
    %v73 = vlaneseq
    %v74 = vshrl.u32 %v73, 7
    %v75 = vsub.s32 5, %v74
    %v76 = vrot.slane %v49, %v75
    %v77 = vlaneseq
    %v78 = vshrl.u32 %v77, 7
    %v79 = vsub.s32 6, %v78
    %v80 = vrot.slane %v49, %v79
    %v81 = vlaneseq
    %v82 = vshrl.u32 %v81, 7
    %v83 = vsub.s32 7, %v82
    %v84 = vrot.slane %v49, %v83
    %v85 = vlaneseq
    %v86 = vshrl.u32 %v85, 7
    %v87 = vsub.s32 0, %v86
    %v88 = vrot.slane %v50, %v87
    %v89 = vlaneseq
    %v90 = vshrl.u32 %v89, 7
    %v91 = vsub.s32 1, %v90
    %v92 = vrot.slane %v50, %v91
    %v93 = vlaneseq
    %v94 = vshrl.u32 %v93, 7
    %v95 = vsub.s32 2, %v94
    %v96 = vrot.slane %v50, %v95
    %v97 = vlaneseq
    %v98 = vshrl.u32 %v97, 7
    %v99 = vsub.s32 3, %v98
    %v100 = vrot.slane %v50, %v99
    %v101 = vlaneseq
    %v102 = vshrl.u32 %v101, 7
    %v103 = vsub.s32 4, %v102
    %v104 = vrot.slane %v50, %v103
    %v105 = vlaneseq
    %v106 = vshrl.u32 %v105, 7
    %v107 = vsub.s32 5, %v106
    %v108 = vrot.slane %v50, %v107
    %v109 = vlaneseq
    %v110 = vshrl.u32 %v109, 7
    %v111 = vsub.s32 6, %v110
    %v112 = vrot.slane %v50, %v111
    %v113 = vlaneseq
    %v114 = vshrl.u32 %v113, 7
    %v115 = vsub.s32 7, %v114
    %v116 = vrot.slane %v50, %v115
    %v141 = vcombine.high %v41, %v41
    %v142 = vcombine.high %v42, %v42
    %v143 = vcombine.high %v43, %v43
    %v144 = vcombine.high %v44, %v44
    %v145 = vcombine.high %v45, %v45
    %v146 = vcombine.high %v46, %v46
    %v147 = vcombine.high %v47, %v47
    %v148 = vcombine.high %v48, %v48
    %v157 = vsub.f32 %v56, %v41
    %v158 = vsub.f32 %v60, %v141
    %v159 = vsub.f32 %v64, %v42
    %v160 = vsub.f32 %v68, %v142
    %v161 = vsub.f32 %v72, %v43
    %v162 = vsub.f32 %v76, %v143
    %v163 = vsub.f32 %v80, %v44
    %v164 = vsub.f32 %v84, %v144
    %v165 = vsub.f32 %v88, %v45
    %v166 = vsub.f32 %v92, %v145
    %v167 = vsub.f32 %v96, %v46
    %v168 = vsub.f32 %v100, %v146
    %v169 = vsub.f32 %v104, %v47
    %v170 = vsub.f32 %v108, %v147
    %v171 = vsub.f32 %v112, %v48
    %v172 = vsub.f32 %v116, %v148
    %v173 = vstv %s40
    %v174 = vmul.f32 %v173, %v157
    %v175 = vmul.f32 %v173, %v158
    %v176 = vmul.f32 %v173, %v159
    %v177 = vmul.f32 %v173, %v160
    %v178 = vmul.f32 %v173, %v161
    %v179 = vmul.f32 %v173, %v162
    %v180 = vmul.f32 %v173, %v163
    %v181 = vmul.f32 %v173, %v164
    %v182 = vmul.f32 %v173, %v165
    %v183 = vmul.f32 %v173, %v166
    %v184 = vmul.f32 %v173, %v167
    %v185 = vmul.f32 %v173, %v168
    %v186 = vmul.f32 %v173, %v169
    %v187 = vmul.f32 %v173, %v170
    %v188 = vmul.f32 %v173, %v171
    %v189 = vmul.f32 %v173, %v172
    %v206 = vcombine.low %v174, %v175
    %v207 = vcombine.low %v176, %v177
    %v208 = vcombine.low %v178, %v179
    %v209 = vcombine.low %v180, %v181
    %v210 = vcombine.low %v182, %v183
    %v211 = vcombine.low %v184, %v185
    %v212 = vcombine.low %v186, %v187
    %v213 = vcombine.low %v188, %v189
    %v222 = vadd.f32 %v41, %v206
    %v223 = vadd.f32 %v42, %v207
    %v224 = vadd.f32 %v43, %v208
    %v225 = vadd.f32 %v44, %v209
    %v226 = vadd.f32 %v45, %v210
    %v227 = vadd.f32 %v46, %v211
    %v228 = vadd.f32 %v47, %v212
    %v229 = vadd.f32 %v48, %v213
    %230 = vst [vmem:[#allocation8] sm:$0xff] %v222
    %231 = vst [vmem:[#allocation8 + $0x8] sm:$0xff] %v223
    %232 = vst [vmem:[#allocation8 + $0x10] sm:$0xff] %v224
    %233 = vst [vmem:[#allocation8 + $0x18] sm:$0xff] %v225
    %234 = vst [vmem:[#allocation8 + $0x20] sm:$0xff] %v226
    %235 = vst [vmem:[#allocation8 + $0x28] sm:$0xff] %v227
    %236 = vst [vmem:[#allocation8 + $0x30] sm:$0xff] %v228
    %237 = vst [vmem:[#allocation8 + $0x38] sm:$0xff] %v229
    // Predicated region
    $region22: #{tpu_custom_call.1} parent=1 // pred_check
      _
    $region23: #{tpu_custom_call.1} parent=1 // pred_check_branch
      %239 = sbr.rel (0) target = $region25
    $region24: #{tpu_custom_call.1} parent=1 // pred_region
      %s241 = ssub.s32 1024, 1024
      %242 = vsyncadd [#allocation5], %s241
      %s244 = sshll.u32 [#allocation8], 4
      %s245 = int_to_ptr.vmem [resolvable:$true] %s244
      %247 = dma.vmem_to_hbm [thread:$0]  %s245, 1024, %s3, [#allocation5]
    $region25: #{tpu_custom_call.1} parent=1 // pred_fallthru
      _
    // Predicated region
    $region26: #{tpu_custom_call.1} parent=1 // pred_check
      _
    $region27: #{tpu_custom_call.1} parent=1 // pred_check_branch
      %249 = sbr.rel (0) target = $region29
    $region28: #{tpu_custom_call.1} parent=1 // pred_region
      %250 = dma.done [#allocation5], 1024
    $region29: #{tpu_custom_call.1} parent=1 // pred_fallthru
      _
    %251 = vsyncpa [#allocation4], 1
    %252 = vsyncpa [#allocation7], 1
    %253 = vsyncpa [#allocation5], 1

</llo_original>
